<compile_context>
chip_gen: v6e
topology: v6e:2x2x1
jax: 0.10.0
libtpu: 0.0.40
codegen_flags: <defaults>
</compile_context>

<pallas_src>
import jax
import jax.numpy as jnp
from jax.experimental import pallas as pl
from jax.experimental.pallas import tpu as pltpu


def _make_mlp_kernel(final_reduce: bool):
    def _mlp_kernel(x_ref, w1_ref, b1_ref, w2_ref, b2_ref, w3_ref, b3_ref, o_ref):
        x = x_ref[...]  # f32 (TB, in_feats) tile, DMA'd straight from HBM
        h1 = jnp.maximum(
            jnp.dot(x, w1_ref[...], preferred_element_type=jnp.float32) + b1_ref[...],
            0.0)
        h2 = jnp.maximum(
            jnp.dot(h1, w2_ref[...], preferred_element_type=jnp.float32) + b2_ref[...],
            0.0)
        if final_reduce:
            # output_size == 1: build the result as a lane-dense (1, TB) row by
            # contracting w3 (as a (1, H2) row) against h2's feature axis.
            # Avoids a (TB, 1) column output (masked single-lane stores and
            # 128x lane-padded output block).
            row = jax.lax.dot_general(
                w3_ref[...], h2,
                dimension_numbers=(((1,), (1,)), ((), ())),
                preferred_element_type=jnp.float32) + b3_ref[...]
            o_ref[...] = row.reshape(o_ref.shape).astype(o_ref.dtype)
        else:
            out = jnp.dot(h2, w3_ref[...],
                          preferred_element_type=jnp.float32) + b3_ref[...]
            o_ref[...] = out.astype(o_ref.dtype)

    return _mlp_kernel


_TB_MAX = 1024  # 1024x32 f32 x tile = 128 KiB; double-buffered ~256 KiB << VMEM.


def _round_up(n: int, m: int) -> int:
    return ((n + m - 1) // m) * m


def _choose_batch_tile(batch: int) -> int:
    if batch <= 8:
        # One block equal to the full batch: no padding, no edge masking.
        return batch
    # Clamp to ceil(batch/2) so the grid has >= 2 steps whenever feasible
    # (v7x megacore splits the "parallel" batch axis across its 2 TCs);
    # multiple of 8 keeps f32 sublane tiling clean.
    return min(_TB_MAX, _round_up(-(-batch // 2), 8))


def fnn_regressor_forward(x, params):
    """x: (batch, look_back, input_size) float32. Returns (batch, output_size)."""
    w1, b1, w2, b2, w3, b3 = params
    batch = x.shape[0]
    x_flat = x.reshape(batch, -1)  # same semantics as torch .view(batch, -1)
    in_feats = x_flat.shape[1]
    h1_size, h2_size, out_size = w1.shape[1], w2.shape[1], w3.shape[1]

    tb = _choose_batch_tile(batch)
    num_tiles = pl.cdiv(batch, tb)
    final_reduce = (out_size == 1)

    # For the lane-dense path w3 is presented as a (1, H2) row (25 floats;
    # the transpose is negligible and happens once outside the kernel).
    w3_arg = w3.T if final_reduce else w3

    flops = 2 * batch * (in_feats * h1_size + h1_size * h2_size + h2_size * out_size)
    bytes_accessed = int(
        x_flat.size * x_flat.dtype.itemsize
        + sum(a.size * a.dtype.itemsize for a in (w1, b1, w2, b2, w3_arg, b3))
        + num_tiles * tb * out_size * 4
    )

    if final_reduce:
        # Lane-dense output: one (1, 1, TB) row per grid step; unambiguously
        # satisfies the (8,128)-or-full-dim block rule on its last two dims.
        out_shape = jax.ShapeDtypeStruct((num_tiles, 1, tb), jnp.float32)
        out_spec = pl.BlockSpec((1, 1, tb), lambda i: (i, 0, 0))
    else:
        out_shape = jax.ShapeDtypeStruct((batch, out_size), jnp.float32)
        out_spec = pl.BlockSpec((tb, out_size), lambda i: (i, 0))

    const = lambda a: pl.BlockSpec(a.shape, lambda i, _nd=None, _a=a: (0,) * _a.ndim)

    out = pl.pallas_call(
        _make_mlp_kernel(final_reduce),
        out_shape=out_shape,
        grid=(num_tiles,),
        in_specs=[
            # Batch-tiled f32 input; Pallas double-buffers these tiles and
            # masks the ragged last block (no wrapper-side pad / cast pass).
            pl.BlockSpec((tb, in_feats), lambda i: (i, 0)),
            const(w1), const(b1),          # weights/biases: VMEM-resident
            const(w2), const(b2),
            const(w3_arg), const(b3),
        ],
        out_specs=out_spec,
        compiler_params=pltpu.CompilerParams(
            dimension_semantics=("parallel",),  # v7x megacore; no-op on v5e/v6e
        ),
        cost_estimate=pl.CostEstimate(
            flops=flops, transcendentals=0, bytes_accessed=bytes_accessed
        ),
    )(x_flat, w1, b1, w2, b2, w3_arg, b3)

    if final_reduce:
        # (num_tiles, 1, tb) -> (num_tiles*tb, 1); padded tail rows (garbage
        # from masked edge-block reads) are discarded here.
        return out.reshape(num_tiles * tb, 1)[:batch]
    return out


def init_params(key, input_size, hidden_size, look_back, output_size):
    """Deterministic synthetic init (PyTorch-style uniform(-1/sqrt(fan_in), +))."""
    dims = [(input_size * look_back, hidden_size), (hidden_size, 25), (25, output_size)]
    params = []
    for i, (fan_in, fan_out) in enumerate(dims):
        kw, kb = jax.random.split(jax.random.fold_in(key, i))
        bound = 1.0 / (fan_in ** 0.5)
        w = jax.random.uniform(kw, (fan_in, fan_out), jnp.float32, -bound, bound)
        b = jax.random.uniform(kb, (1, fan_out), jnp.float32, -bound, bound)
        params.extend([w, b])
    return tuple(params)


if __name__ == "__main__":
    # Module hyperparameters (small, consistent with the forward pass).
    input_size, hidden_size, look_back, output_size = 4, 32, 8, 1
    batch = 2

    key = jax.random.PRNGKey(0)
    k_x, k_p = jax.random.split(key)
    x = jax.random.normal(k_x, (batch, look_back, input_size), jnp.float32)
    params = init_params(k_p, input_size, hidden_size, look_back, output_size)

    out = fnn_regressor_forward(x, params)
    out = jax.block_until_ready(out)

    # Pure-JAX f32 reference of the same semantics. Kernel keeps f32 operands
    # end-to-end, so only MXU matmul rounding differs -> tight tolerance.
    w1, b1, w2, b2, w3, b3 = params
    xf = x.reshape(batch, -1)
    ref = jnp.maximum(xf @ w1 + b1, 0.0)
    ref = jnp.maximum(ref @ w2 + b2, 0.0)
    ref = ref @ w3 + b3
    assert out.shape == (batch, output_size)
    assert jnp.allclose(out, ref, atol=1e-2, rtol=1e-2), "mismatch vs reference"

    print("KERNEL_OK")
</pallas_src>

<mosaic_0001>
module attributes {stable_mosaic.version = 11 : i64} {
  func.func @_mlp_kernel(%arg0: i32, %arg1: memref<2x32xf32, #tpu.memory_space<vmem>>, %arg2: memref<32x32xf32, #tpu.memory_space<vmem>>, %arg3: memref<1x32xf32, #tpu.memory_space<vmem>>, %arg4: memref<32x25xf32, #tpu.memory_space<vmem>>, %arg5: memref<1x25xf32, #tpu.memory_space<vmem>>, %arg6: memref<1x25xf32, #tpu.memory_space<vmem>>, %arg7: memref<1x1xf32, #tpu.memory_space<vmem>>, %arg8: memref<1x1x2xf32, #tpu.memory_space<vmem>>) attributes {dimension_semantics = [#tpu.dimension_semantics<parallel>], iteration_bounds = array<i64: 1>, scalar_prefetch = 0 : i64, scratch_operands = 0 : i64, tpu.core_type = #tpu.core_type<tc>, window_params = [{transform_indices = @transform_0, window_bounds = array<i64: 2, 32>}, {pipeline_mode = #tpu.pipeline_mode<synchronous>, transform_indices = @transform_1, window_bounds = array<i64: 32, 32>}, {pipeline_mode = #tpu.pipeline_mode<synchronous>, transform_indices = @transform_2, window_bounds = array<i64: 1, 32>}, {pipeline_mode = #tpu.pipeline_mode<synchronous>, transform_indices = @transform_3, window_bounds = array<i64: 32, 25>}, {pipeline_mode = #tpu.pipeline_mode<synchronous>, transform_indices = @transform_4, window_bounds = array<i64: 1, 25>}, {pipeline_mode = #tpu.pipeline_mode<synchronous>, transform_indices = @transform_5, window_bounds = array<i64: 1, 25>}, {pipeline_mode = #tpu.pipeline_mode<synchronous>, transform_indices = @transform_6, window_bounds = array<i64: 1, 1>}, {transform_indices = @transform_7, window_bounds = array<i64: 1, 1, 2>}]} {
    %c0 = arith.constant 0 : index
    %c0_0 = arith.constant 0 : index
    %0 = vector.load %arg1[%c0, %c0_0] : memref<2x32xf32, #tpu.memory_space<vmem>>, vector<2x32xf32>
    %c0_1 = arith.constant 0 : index
    %c0_2 = arith.constant 0 : index
    %1 = vector.load %arg2[%c0_1, %c0_2] : memref<32x32xf32, #tpu.memory_space<vmem>>, vector<32x32xf32>
    %cst = arith.constant dense<0.000000e+00> : vector<2x32xf32>
    %2 = tpu.matmul %0, %1, %cst {dimension_numbers = #tpu.dot_dimension_numbers<[1], [0], [0], [1], [0, 0, 1, 1], [], []>} : vector<2x32xf32>, vector<32x32xf32>, vector<2x32xf32> -> vector<2x32xf32>
    %c0_3 = arith.constant 0 : index
    %c0_4 = arith.constant 0 : index
    %3 = vector.load %arg3[%c0_3, %c0_4] : memref<1x32xf32, #tpu.memory_space<vmem>>, vector<1x32xf32>
    %4 = vector.broadcast %3 : vector<1x32xf32> to vector<2x32xf32>
    %5 = arith.addf %2, %4 : vector<2x32xf32>
    %cst_5 = arith.constant 0.000000e+00 : f32
    %6 = vector.broadcast %cst_5 : f32 to vector<2x32xf32>
    %7 = arith.maximumf %5, %6 : vector<2x32xf32>
    %c0_6 = arith.constant 0 : index
    %c0_7 = arith.constant 0 : index
    %8 = vector.load %arg4[%c0_6, %c0_7] : memref<32x25xf32, #tpu.memory_space<vmem>>, vector<32x25xf32>
    %cst_8 = arith.constant dense<0.000000e+00> : vector<2x25xf32>
    %9 = tpu.matmul %7, %8, %cst_8 {dimension_numbers = #tpu.dot_dimension_numbers<[1], [0], [0], [1], [0, 0, 1, 1], [], []>} : vector<2x32xf32>, vector<32x25xf32>, vector<2x25xf32> -> vector<2x25xf32>
    %c0_9 = arith.constant 0 : index
    %c0_10 = arith.constant 0 : index
    %10 = vector.load %arg5[%c0_9, %c0_10] : memref<1x25xf32, #tpu.memory_space<vmem>>, vector<1x25xf32>
    %11 = vector.broadcast %10 : vector<1x25xf32> to vector<2x25xf32>
    %12 = arith.addf %9, %11 : vector<2x25xf32>
    %cst_11 = arith.constant 0.000000e+00 : f32
    %13 = vector.broadcast %cst_11 : f32 to vector<2x25xf32>
    %14 = arith.maximumf %12, %13 : vector<2x25xf32>
    %c0_12 = arith.constant 0 : index
    %c0_13 = arith.constant 0 : index
    %15 = vector.load %arg6[%c0_12, %c0_13] : memref<1x25xf32, #tpu.memory_space<vmem>>, vector<1x25xf32>
    %cst_14 = arith.constant dense<0.000000e+00> : vector<1x2xf32>
    %16 = tpu.matmul %15, %14, %cst_14 {dimension_numbers = #tpu.dot_dimension_numbers<[1], [1], [0], [0], [0, 0, 1, 0], [], []>} : vector<1x25xf32>, vector<2x25xf32>, vector<1x2xf32> -> vector<1x2xf32>
    %c0_15 = arith.constant 0 : index
    %c0_16 = arith.constant 0 : index
    %17 = vector.load %arg7[%c0_15, %c0_16] : memref<1x1xf32, #tpu.memory_space<vmem>>, vector<1x1xf32>
    %18 = vector.broadcast %17 : vector<1x1xf32> to vector<1x2xf32>
    %19 = arith.addf %16, %18 : vector<1x2xf32>
    %20 = vector.shape_cast %19 : vector<1x2xf32> to vector<1x1x2xf32>
    %c0_17 = arith.constant 0 : index
    %c0_18 = arith.constant 0 : index
    %c0_19 = arith.constant 0 : index
    %21 = vector.load %arg8[%c0_17, %c0_18, %c0_19] : memref<1x1x2xf32, #tpu.memory_space<vmem>>, vector<1x1x2xf32>
    tpu.vector_store %arg8[%c0_17, %c0_18, %c0_19], %20 {strides = array<i32>} : memref<1x1x2xf32, #tpu.memory_space<vmem>>, vector<1x1x2xf32>,
    return
  }
  func.func @transform_0(%arg0: i32) -> (i32, i32) {
    %c0_i32 = arith.constant 0 : i32
    %c0_i32_0 = arith.constant 0 : i32
    return %arg0, %c0_i32 : i32, i32
  }
  func.func @transform_1(%arg0: i32) -> (i32, i32) {
    %c0_i32 = arith.constant 0 : i32
    %c0_i32_0 = arith.constant 0 : i32
    %c0_i32_1 = arith.constant 0 : i32
    return %c0_i32, %c0_i32_0 : i32, i32
  }
  func.func @transform_2(%arg0: i32) -> (i32, i32) {
    %c0_i32 = arith.constant 0 : i32
    %c0_i32_0 = arith.constant 0 : i32
    %c0_i32_1 = arith.constant 0 : i32
    return %c0_i32, %c0_i32_0 : i32, i32
  }
  func.func @transform_3(%arg0: i32) -> (i32, i32) {
    %c0_i32 = arith.constant 0 : i32
    %c0_i32_0 = arith.constant 0 : i32
    %c0_i32_1 = arith.constant 0 : i32
    return %c0_i32, %c0_i32_0 : i32, i32
  }
  func.func @transform_4(%arg0: i32) -> (i32, i32) {
    %c0_i32 = arith.constant 0 : i32
    %c0_i32_0 = arith.constant 0 : i32
    %c0_i32_1 = arith.constant 0 : i32
    return %c0_i32, %c0_i32_0 : i32, i32
  }
  func.func @transform_5(%arg0: i32) -> (i32, i32) {
    %c0_i32 = arith.constant 0 : i32
    %c0_i32_0 = arith.constant 0 : i32
    %c0_i32_1 = arith.constant 0 : i32
    return %c0_i32, %c0_i32_0 : i32, i32
  }
  func.func @transform_6(%arg0: i32) -> (i32, i32) {
    %c0_i32 = arith.constant 0 : i32
    %c0_i32_0 = arith.constant 0 : i32
    %c0_i32_1 = arith.constant 0 : i32
    return %c0_i32, %c0_i32_0 : i32, i32
  }
  func.func @transform_7(%arg0: i32) -> (i32, i32, i32) {
    %c0_i32 = arith.constant 0 : i32
    %c0_i32_0 = arith.constant 0 : i32
    %c0_i32_1 = arith.constant 0 : i32
    return %arg0, %c0_i32, %c0_i32_0 : i32, i32, i32
  }
}

</mosaic_0001>

<llo_original>
// kernel: tpu_custom_call.1
$region0: #{tpu_custom_call.1}
  #allocation0 [shape = 'u32[]', space=smem, size = 0x4, offset = 0x4, fixed_abs, tag = 'smem constant byte address 0x4 - core index']
  #allocation1 [shape = 'u32[144,128]{1,0:T(1,128)}', space=vmem, size = 0x12000, scoped, tag = 'internal scratch']
  #allocation2 [shape = 'f32[1,1]{1,0:T(1,128)S(1)}', space=vmem, size = 0x200, scoped, tag = 'scoped memory for tpu_custom_call.1']
  %s0 = inlined_call_operand.vmem [shape: f32[2,32], index: 0, kind: input, shape index: {}]
  %s1 = inlined_call_operand.hbm [shape: f32[32,32], index: 1, kind: input, shape index: {}]
  %s2 = inlined_call_operand.vmem [shape: f32[1,32], index: 2, kind: input, shape index: {}]
  %s3 = inlined_call_operand.hbm [shape: f32[32,25], index: 3, kind: input, shape index: {}]
  %s4 = inlined_call_operand.vmem [shape: f32[1,25], index: 4, kind: input, shape index: {}]
  %s5 = inlined_call_operand.vmem [shape: f32[1,25], index: 5, kind: input, shape index: {}]
  %s6 = inlined_call_operand.<no memory space> [shape: f32[1,1], index: 6, kind: input, shape index: {}]
  %s7 = inlined_call_operand.hbm [shape: f32[1,1,2], index: 7, kind: output, shape index: {}]
  %s8 = sld [smem:[#allocation0]]
  $region46: #{tpu_custom_call.1} parent=0
    _
  %s10 = ssub.s32 1, %s8
  %s11 = scalar_select 0, %s10, %s8
  %v12 = vstv %s6
  %13 = vst [vmem:[#allocation2] sm:$0x1] %v12
  $region1: #{tpu_custom_call.1} parent=0
    #allocation3 [shape = 'u8[16384]{0}', space=vmem, size = 0x4000, scoped, tag = 'input window, operand 1, single buffered']
    #allocation4 [shape = 's32[1]{0}', space=sflag, size = 0x4, scoped, tag = 'scoped memory for tpu_custom_call.1']
    #allocation5 [shape = 's32[1]{0}', space=sflag, size = 0x4, scoped, tag = 'scoped memory for tpu_custom_call.1']
    #allocation6 [shape = 'u8[16384]{0}', space=vmem, size = 0x4000, scoped, tag = 'input window, operand 3, single buffered']
    #allocation7 [shape = 's32[1]{0}', space=sflag, size = 0x4, scoped, tag = 'scoped memory for tpu_custom_call.1']
    #allocation8 [shape = 'u8[512]{0}', space=vmem, size = 0x400, scoped, tag = 'output window, operand 0, single buffered']
    %14 = vsyncpa [#allocation4], 0
    %15 = vsyncpa [#allocation7], 0
    %16 = vsyncpa [#allocation5], 0
    // Predicated region
    $region2: #{tpu_custom_call.1} parent=1 // pred_check
      _
    $region3: #{tpu_custom_call.1} parent=1 // pred_check_branch
      %18 = sbr.rel (0) target = $region5
    $region4: #{tpu_custom_call.1} parent=1 // pred_region
      _
    $region5: #{tpu_custom_call.1} parent=1 // pred_fallthru
      _
    // Predicated region
    $region6: #{tpu_custom_call.1} parent=1 // pred_check
      _
    $region7: #{tpu_custom_call.1} parent=1 // pred_check_branch
      %20 = sbr.rel (0) target = $region9
    $region8: #{tpu_custom_call.1} parent=1 // pred_region
      %s22 = ssub.s32 512, 512
      %23 = vsyncadd [#allocation4], %s22
      %s24 = sshll.u32 [#allocation3], 4
      %s25 = int_to_ptr.vmem [resolvable:$true] %s24
      %30 = dma.hbm_to_vmem [thread:$0]  %s1, 512, %s25, [#allocation4], 128, 128, 8
    $region9: #{tpu_custom_call.1} parent=1 // pred_fallthru
      _
    // Predicated region
    $region10: #{tpu_custom_call.1} parent=1 // pred_check
      _
    $region11: #{tpu_custom_call.1} parent=1 // pred_check_branch
      %32 = sbr.rel (0) target = $region13
    $region12: #{tpu_custom_call.1} parent=1 // pred_region
      _
    $region13: #{tpu_custom_call.1} parent=1 // pred_fallthru
      _
    // Predicated region
    $region14: #{tpu_custom_call.1} parent=1 // pred_check
      _
    $region15: #{tpu_custom_call.1} parent=1 // pred_check_branch
      %34 = sbr.rel (0) target = $region17
    $region16: #{tpu_custom_call.1} parent=1 // pred_region
      %s36 = ssub.s32 512, 512
      %37 = vsyncadd [#allocation7], %s36
      %s38 = sshll.u32 [#allocation6], 4
      %s39 = int_to_ptr.vmem [resolvable:$true] %s38
      %44 = dma.hbm_to_vmem [thread:$0]  %s3, 512, %s39, [#allocation7], 128, 128, 8
    $region17: #{tpu_custom_call.1} parent=1 // pred_fallthru
      _
    // Predicated region
    $region18: #{tpu_custom_call.1} parent=1 // pred_check
      _
    $region19: #{tpu_custom_call.1} parent=1 // pred_check_branch
      %46 = sbr.rel (0) target = $region21
    $region20: #{tpu_custom_call.1} parent=1 // pred_region
      _
    $region21: #{tpu_custom_call.1} parent=1 // pred_fallthru
      _
    // Predicated region
    $region22: #{tpu_custom_call.1} parent=1 // pred_check
      _
    $region23: #{tpu_custom_call.1} parent=1 // pred_check_branch
      %48 = sbr.rel (0) target = $region25
    $region24: #{tpu_custom_call.1} parent=1 // pred_region
      _
    $region25: #{tpu_custom_call.1} parent=1 // pred_fallthru
      _
    // Predicated region
    $region26: #{tpu_custom_call.1} parent=1 // pred_check
      _
    $region27: #{tpu_custom_call.1} parent=1 // pred_check_branch
      %50 = sbr.rel (0) target = $region29
    $region28: #{tpu_custom_call.1} parent=1 // pred_region
      _
    $region29: #{tpu_custom_call.1} parent=1 // pred_fallthru
      _
    // Predicated region
    $region30: #{tpu_custom_call.1} parent=1 // pred_check
      _
    $region31: #{tpu_custom_call.1} parent=1 // pred_check_branch
      %52 = sbr.rel (0) target = $region33
    $region32: #{tpu_custom_call.1} parent=1 // pred_region
      %53 = dma.done [#allocation4], 512
    $region33: #{tpu_custom_call.1} parent=1 // pred_fallthru
      _
    // Predicated region
    $region34: #{tpu_custom_call.1} parent=1 // pred_check
      _
    $region35: #{tpu_custom_call.1} parent=1 // pred_check_branch
      %55 = sbr.rel (0) target = $region37
    $region36: #{tpu_custom_call.1} parent=1 // pred_region
      %56 = dma.done [#allocation7], 512
    $region37: #{tpu_custom_call.1} parent=1 // pred_fallthru
      _
    %v57 = vld [vmem:[%s0] sm:$0x3]
    %v58 = vld [vmem:[#allocation3] sm:$0xff]
    %v59 = vld [vmem:[#allocation3 + $0x8] sm:$0xff]
    %v60 = vld [vmem:[#allocation3 + $0x10] sm:$0xff]
    %v61 = vld [vmem:[#allocation3 + $0x18] sm:$0xff]
    %v62 = vld [vmem:[%s2] sm:$0x1]
    %v64 = vlaneseq
    %v65 = vshrl.u32 %v64, 7
    %v66 = vsub.s32 0, %v65
    %v67 = vrot.slane %v62, %v66
    %vm69 = vcmask 261120
    %v71 = vsel %vm69, %v57, 0
    %73 = vmatprep.subr.mxu0 0.0
    %74 = vmatpush1.msra.mxu0 0.0
    %75 = vmatprep.subr.mxu0 0.0
    %76 = vmatpush1.msra.mxu0 0.0
    %77 = vmatprep.subr.mxu0 0.0
    %78 = vmatpush1.msra.mxu0 0.0
    %79 = vmatprep.subr.mxu0 0.0
    %80 = vmatpush1.msra.mxu0 0.0
    %81 = vmatprep.subr.mxu0 0.0
    %82 = vmatpush1.msra.mxu0 0.0
    %83 = vmatprep.subr.mxu0 0.0
    %84 = vmatpush1.msra.mxu0 0.0
    %85 = vmatprep.subr.mxu0 0.0
    %86 = vmatpush1.msra.mxu0 0.0
    %87 = vmatprep.subr.mxu0 0.0
    %88 = vmatpush1.msra.mxu0 0.0
    %89 = vmatprep.subr.mxu0 0.0
    %90 = vmatpush1.msra.mxu0 0.0
    %91 = vmatprep.subr.mxu0 0.0
    %92 = vmatpush1.msra.mxu0 0.0
    %93 = vmatprep.subr.mxu0 0.0
    %94 = vmatpush1.msra.mxu0 0.0
    %95 = vmatprep.subr.mxu0 0.0
    %96 = vmatpush1.msra.mxu0 0.0
    %97 = vmatprep.subr.mxu0 0.0
    %98 = vmatpush1.msra.mxu0 %v61
    %99 = vmatprep.subr.mxu0 0.0
    %100 = vmatpush1.msra.mxu0 %v60
    %101 = vmatprep.subr.mxu0 0.0
    %102 = vmatpush1.msra.mxu0 %v59
    %103 = vmatprep.subr.mxu0 0.0
    %104 = vmatpush1.msra.mxu0 %v58
    %105 = vmatprep.subr.mxu0 0.0
    %106 = vmatpush2.msra.mxu0 0.0
    %107 = vmatprep.subr.mxu0 0.0
    %108 = vmatpush2.msra.mxu0 0.0
    %109 = vmatprep.subr.mxu0 0.0
    %110 = vmatpush2.msra.mxu0 0.0
    %111 = vmatprep.subr.mxu0 0.0
    %112 = vmatpush2.msra.mxu0 0.0
    %113 = vmatprep.subr.mxu0 0.0
    %114 = vmatpush2.msra.mxu0 0.0
    %115 = vmatprep.subr.mxu0 0.0
    %116 = vmatpush2.msra.mxu0 0.0
    %117 = vmatprep.subr.mxu0 0.0
    %118 = vmatpush2.msra.mxu0 0.0
    %119 = vmatprep.subr.mxu0 0.0
    %120 = vmatpush2.msra.mxu0 0.0
    %121 = vmatprep.subr.mxu0 0.0
    %122 = vmatpush2.msra.mxu0 0.0
    %123 = vmatprep.subr.mxu0 0.0
    %124 = vmatpush2.msra.mxu0 0.0
    %125 = vmatprep.subr.mxu0 0.0
    %126 = vmatpush2.msra.mxu0 0.0
    %127 = vmatprep.subr.mxu0 0.0
    %128 = vmatpush2.msra.mxu0 0.0
    %129 = vmatprep.subr.mxu0 0.0
    %130 = vmatpush2.msra.mxu0 0.0
    %131 = vmatprep.subr.mxu0 0.0
    %132 = vmatpush2.msra.mxu0 0.0
    %133 = vmatprep.subr.mxu0 0.0
    %134 = vmatpush2.msra.mxu0 0.0
    %135 = vmatprep.subr.mxu0 0.0
    %136 = vmatpush2.msra.mxu0 0.0
    %137 = vmatprep.mubr.f32.mxu0 0.0
    %138 = vmatmul.mubr.f32.gmra.mxu0 %v71
    %v139 = vpop.f32.mrf.mxu0
    %v140 = vadd.f32 %v67, %v139
    %v141 = vpop.f32.mrf.mxu0
    %142 = vdwg.mxu0
    %v143 = vmax.f32 %v140, 0.0
    %v144 = vld [vmem:[#allocation6] sm:$0xff]
    %v145 = vld [vmem:[#allocation6 + $0x8] sm:$0xff]
    %v146 = vld [vmem:[#allocation6 + $0x10] sm:$0xff]
    %v147 = vld [vmem:[#allocation6 + $0x18] sm:$0xff]
    %v148 = vld [vmem:[%s4] sm:$0x1]
    %v150 = vlaneseq
    %v151 = vshrl.u32 %v150, 7
    %v152 = vsub.s32 0, %v151
    %v153 = vrot.slane %v148, %v152
    %v156 = vsel %vm69, %v143, 0
    %158 = vmatprep.subr.mxu0 0.0
    %159 = vmatpush1.msra.mxu0 0.0
    %160 = vmatprep.subr.mxu0 0.0
    %161 = vmatpush1.msra.mxu0 0.0
    %162 = vmatprep.subr.mxu0 0.0
    %163 = vmatpush1.msra.mxu0 0.0
    %164 = vmatprep.subr.mxu0 0.0
    %165 = vmatpush1.msra.mxu0 0.0
    %166 = vmatprep.subr.mxu0 0.0
    %167 = vmatpush1.msra.mxu0 0.0
    %168 = vmatprep.subr.mxu0 0.0
    %169 = vmatpush1.msra.mxu0 0.0
    %170 = vmatprep.subr.mxu0 0.0
    %171 = vmatpush1.msra.mxu0 0.0
    %172 = vmatprep.subr.mxu0 0.0
    %173 = vmatpush1.msra.mxu0 0.0
    %174 = vmatprep.subr.mxu0 0.0
    %175 = vmatpush1.msra.mxu0 0.0
    %176 = vmatprep.subr.mxu0 0.0
    %177 = vmatpush1.msra.mxu0 0.0
    %178 = vmatprep.subr.mxu0 0.0
    %179 = vmatpush1.msra.mxu0 0.0
    %180 = vmatprep.subr.mxu0 0.0
    %181 = vmatpush1.msra.mxu0 0.0
    %182 = vmatprep.subr.mxu0 0.0
    %183 = vmatpush1.msra.mxu0 %v147
    %184 = vmatprep.subr.mxu0 0.0
    %185 = vmatpush1.msra.mxu0 %v146
    %186 = vmatprep.subr.mxu0 0.0
    %187 = vmatpush1.msra.mxu0 %v145
    %188 = vmatprep.subr.mxu0 0.0
    %189 = vmatpush1.msra.mxu0 %v144
    %190 = vmatprep.subr.mxu0 0.0
    %191 = vmatpush2.msra.mxu0 0.0
    %192 = vmatprep.subr.mxu0 0.0
    %193 = vmatpush2.msra.mxu0 0.0
    %194 = vmatprep.subr.mxu0 0.0
    %195 = vmatpush2.msra.mxu0 0.0
    %196 = vmatprep.subr.mxu0 0.0
    %197 = vmatpush2.msra.mxu0 0.0
    %198 = vmatprep.subr.mxu0 0.0
    %199 = vmatpush2.msra.mxu0 0.0
    %200 = vmatprep.subr.mxu0 0.0
    %201 = vmatpush2.msra.mxu0 0.0
    %202 = vmatprep.subr.mxu0 0.0
    %203 = vmatpush2.msra.mxu0 0.0
    %204 = vmatprep.subr.mxu0 0.0
    %205 = vmatpush2.msra.mxu0 0.0
    %206 = vmatprep.subr.mxu0 0.0
    %207 = vmatpush2.msra.mxu0 0.0
    %208 = vmatprep.subr.mxu0 0.0
    %209 = vmatpush2.msra.mxu0 0.0
    %210 = vmatprep.subr.mxu0 0.0
    %211 = vmatpush2.msra.mxu0 0.0
    %212 = vmatprep.subr.mxu0 0.0
    %213 = vmatpush2.msra.mxu0 0.0
    %214 = vmatprep.subr.mxu0 0.0
    %215 = vmatpush2.msra.mxu0 0.0
    %216 = vmatprep.subr.mxu0 0.0
    %217 = vmatpush2.msra.mxu0 0.0
    %218 = vmatprep.subr.mxu0 0.0
    %219 = vmatpush2.msra.mxu0 0.0
    %220 = vmatprep.subr.mxu0 0.0
    %221 = vmatpush2.msra.mxu0 0.0
    %222 = vmatprep.mubr.f32.mxu0 0.0
    %223 = vmatmul.mubr.f32.gmra.mxu0 %v156
    %v224 = vpop.f32.mrf.mxu0
    %v225 = vadd.f32 %v153, %v224
    %v226 = vpop.f32.mrf.mxu0
    %227 = vdwg.mxu0
    %v228 = vmax.f32 %v225, 0.0
    %v229 = vld [vmem:[%s5] sm:$0x1]
    %v230 = vld [vmem:[#allocation2] sm:$0x1]
    %232 = vset.pattern.permute.xlu0 0
    %233 = vperm.xlu0 %232, %v230
    %v234 = vpop.permute.xlu0 %233
    %v236 = vlaneseq
    %v237 = vshrl.u32 %v236, 7
    %v238 = vsub.s32 0, %v237
    %v239 = vrot.slane %v234, %v238
    %vm240 = vcmask 203776
    %v242 = vsel %vm240, %v229, 0
    %v245 = vsel %vm240, %v228, 0
    %247 = vmatprep.subr.mxu0 0.0
    %248 = vmatpush1.xpose.msra.mxu0 0.0
    %249 = vmatprep.subr.mxu0 0.0
    %250 = vmatpush1.xpose.msra.mxu0 0.0
    %251 = vmatprep.subr.mxu0 0.0
    %252 = vmatpush1.xpose.msra.mxu0 0.0
    %253 = vmatprep.subr.mxu0 0.0
    %254 = vmatpush1.xpose.msra.mxu0 0.0
    %255 = vmatprep.subr.mxu0 0.0
    %256 = vmatpush1.xpose.msra.mxu0 0.0
    %257 = vmatprep.subr.mxu0 0.0
    %258 = vmatpush1.xpose.msra.mxu0 0.0
    %259 = vmatprep.subr.mxu0 0.0
    %260 = vmatpush1.xpose.msra.mxu0 0.0
    %261 = vmatprep.subr.mxu0 0.0
    %262 = vmatpush1.xpose.msra.mxu0 0.0
    %263 = vmatprep.subr.mxu0 0.0
    %264 = vmatpush1.xpose.msra.mxu0 0.0
    %265 = vmatprep.subr.mxu0 0.0
    %266 = vmatpush1.xpose.msra.mxu0 0.0
    %267 = vmatprep.subr.mxu0 0.0
    %268 = vmatpush1.xpose.msra.mxu0 0.0
    %269 = vmatprep.subr.mxu0 0.0
    %270 = vmatpush1.xpose.msra.mxu0 0.0
    %271 = vmatprep.subr.mxu0 0.0
    %272 = vmatpush1.xpose.msra.mxu0 0.0
    %273 = vmatprep.subr.mxu0 0.0
    %274 = vmatpush1.xpose.msra.mxu0 0.0
    %275 = vmatprep.subr.mxu0 0.0
    %276 = vmatpush1.xpose.msra.mxu0 0.0
    %277 = vmatprep.subr.mxu0 0.0
    %278 = vmatpush1.xpose.msra.mxu0 %v245
    %279 = vmatprep.subr.mxu0 0.0
    %280 = vmatpush2.xpose.msra.mxu0 0.0
    %281 = vmatprep.subr.mxu0 0.0
    %282 = vmatpush2.xpose.msra.mxu0 0.0
    %283 = vmatprep.subr.mxu0 0.0
    %284 = vmatpush2.xpose.msra.mxu0 0.0
    %285 = vmatprep.subr.mxu0 0.0
    %286 = vmatpush2.xpose.msra.mxu0 0.0
    %287 = vmatprep.subr.mxu0 0.0
    %288 = vmatpush2.xpose.msra.mxu0 0.0
    %289 = vmatprep.subr.mxu0 0.0
    %290 = vmatpush2.xpose.msra.mxu0 0.0
    %291 = vmatprep.subr.mxu0 0.0
    %292 = vmatpush2.xpose.msra.mxu0 0.0
    %293 = vmatprep.subr.mxu0 0.0
    %294 = vmatpush2.xpose.msra.mxu0 0.0
    %295 = vmatprep.subr.mxu0 0.0
    %296 = vmatpush2.xpose.msra.mxu0 0.0
    %297 = vmatprep.subr.mxu0 0.0
    %298 = vmatpush2.xpose.msra.mxu0 0.0
    %299 = vmatprep.subr.mxu0 0.0
    %300 = vmatpush2.xpose.msra.mxu0 0.0
    %301 = vmatprep.subr.mxu0 0.0
    %302 = vmatpush2.xpose.msra.mxu0 0.0
    %303 = vmatprep.subr.mxu0 0.0
    %304 = vmatpush2.xpose.msra.mxu0 0.0
    %305 = vmatprep.subr.mxu0 0.0
    %306 = vmatpush2.xpose.msra.mxu0 0.0
    %307 = vmatprep.subr.mxu0 0.0
    %308 = vmatpush2.xpose.msra.mxu0 0.0
    %309 = vmatprep.subr.mxu0 0.0
    %310 = vmatpush2.xpose.msra.mxu0 0.0
    %311 = vmatprep.mubr.f32.mxu0 0.0
    %312 = vmatmul.mubr.f32.gmra.mxu0 %v242
    %v313 = vpop.f32.mrf.mxu0
    %v314 = vadd.f32 %v239, %v313
    %v315 = vpop.f32.mrf.mxu0
    %316 = vdwg.mxu0
    %vm317 = vcmask 8192
    %318 = vst.msk [vmem:[#allocation8] sm:$0x1] %vm317, %v314
    // Predicated region
    $region38: #{tpu_custom_call.1} parent=1 // pred_check
      _
    $region39: #{tpu_custom_call.1} parent=1 // pred_check_branch
      %320 = sbr.rel (0) target = $region41
    $region40: #{tpu_custom_call.1} parent=1 // pred_region
      %s322 = ssub.s32 16, 16
      %323 = vsyncadd [#allocation5], %s322
      %s325 = sshll.u32 [#allocation8], 4
      %s326 = int_to_ptr.vmem [resolvable:$true] %s325
      %328 = dma.vmem_to_hbm [thread:$0]  %s326, 16, %s7, [#allocation5]
    $region41: #{tpu_custom_call.1} parent=1 // pred_fallthru
      _
    // Predicated region
    $region42: #{tpu_custom_call.1} parent=1 // pred_check
      _
    $region43: #{tpu_custom_call.1} parent=1 // pred_check_branch
      %330 = sbr.rel (0) target = $region45
    $region44: #{tpu_custom_call.1} parent=1 // pred_region
      %331 = dma.done [#allocation5], 16
    $region45: #{tpu_custom_call.1} parent=1 // pred_fallthru
      _
    %332 = vsyncpa [#allocation4], 1
    %333 = vsyncpa [#allocation7], 1
    %334 = vsyncpa [#allocation5], 1

</llo_original>
